<compile_context>
chip_gen: v6e
topology: v6e:2x2x1
jax: 0.10.0
libtpu: 0.0.40
codegen_flags: <defaults>
</compile_context>

<pallas_src>
import functools
import math

import jax
import jax.numpy as jnp
from jax.experimental import pallas as pl
from jax.experimental.pallas import tpu as pltpu


_DMA_WINDOW = 16  # outstanding row-gather DMAs on the slow (HBM) path


def _round_up(x, m):
    return (x + m - 1) // m * m


# --------------------------------------------------------------------------
# Fast path: table resident in VMEM, one-hot MXU gather, fused scale.
# --------------------------------------------------------------------------
def _resident_table_kernel(ids_ref, table_ref, out_ref, *, scale, vocab):
    # ids_ref:   (TB, 1) int32 in VMEM (per-block ids, column layout so the
    #            token axis sits on sublanes for the one-hot compare)
    # table_ref: (V, Dp) resident VMEM block (same block every grid step)
    # out_ref:   (TB, Dp) VMEM output block (lane-dense)
    ids = ids_ref[...]                                             # (TB, 1)
    tb = ids.shape[0]
    vocab_iota = jax.lax.broadcasted_iota(jnp.int32, (tb, vocab), 1)
    one_hot = (ids == vocab_iota).astype(table_ref.dtype)          # (TB, V)
    gathered = jnp.dot(one_hot, table_ref[...],
                       preferred_element_type=jnp.float32)         # (TB, Dp)
    out_ref[...] = (gathered * scale).astype(out_ref.dtype)


# --------------------------------------------------------------------------
# Slow path: table in HBM, windowed row-gather DMA straight into out_ref.
# --------------------------------------------------------------------------
def _hbm_gather_kernel(ids_ref, table_ref, out_ref, copy_sems, *,
                       scale, tokens_per_block, n_tokens, window):
    # ids_ref:   (TB,) int32 in SMEM (per-block ids)
    # table_ref: (V, Dp) in HBM (memory_space=pl.ANY)
    # out_ref:   (TB, Dp) VMEM output block — DMA rows land here directly
    # copy_sems: (window,) DMA semaphores
    tb = tokens_per_block
    base = pl.program_id(0) * tb
    n_valid = jnp.minimum(tb, n_tokens - base)     # real tokens in this block

    def start(j):
        row = ids_ref[j]
        pltpu.make_async_copy(
            table_ref.at[pl.ds(row, 1), :],        # (1, Dp) row in HBM
            out_ref.at[pl.ds(j, 1), :],            # straight into the output
            copy_sems.at[jax.lax.rem(j, window)],
        ).start()

    def wait(j):
        # Only the transfer size matters for the wait; reuse row 0 as src.
        pltpu.make_async_copy(
            table_ref.at[pl.ds(0, 1), :],
            out_ref.at[pl.ds(j, 1), :],
            copy_sems.at[jax.lax.rem(j, window)],
        ).wait()

    # Prime the window (static trip count, fully unrolled).
    def prime_body(j, carry):
        @pl.when(j < n_valid)
        def _():
            start(j)
        return carry

    jax.lax.fori_loop(0, min(window, tb), prime_body, 0, unroll=True)

    # Steady state: wait row j, immediately refill the window with row j+W.
    # Tail guard: padded tokens never issue (or wait on) a DMA.
    def steady_body(j, carry):
        @pl.when(j < n_valid)
        def _():
            wait(j)

        @pl.when(j + window < n_valid)
        def _():
            start(j + window)
        return carry

    jax.lax.fori_loop(0, tb, steady_body, 0, unroll=8)

    # Fused sqrt(d_model) scale, single VPU pass over the block.  Padded rows
    # hold garbage but are sliced off by the wrapper.
    out_ref[...] = (out_ref[...] * scale).astype(out_ref.dtype)
    # TODO(synk): for bf16/int8 tables, bitcast rows to u32 containers for the
    # DMA and/or add cross-block prefetch (P4) of the next block's rows.


# --------------------------------------------------------------------------
# Wrapper
# --------------------------------------------------------------------------
def input_embeddings(x_ids, table, *, d_model, token_block=512,
                     resident_table_bytes=8 * 1024 * 1024):
    """x_ids: (B, S) integer token ids; table: (V, D) float embedding table.

    Returns (B, S, D) = table[x_ids] * sqrt(d_model).
    """
    B, S = x_ids.shape
    V, D = table.shape
    assert D == d_model
    scale = float(math.sqrt(d_model))
    out_dtype = table.dtype
    itemsize = jnp.dtype(table.dtype).itemsize

    # Pad d_model to a multiple of 128 -> lane-dense, unmasked output stores.
    D_pad = _round_up(D, 128)
    if D_pad != D:
        table = jnp.pad(table, ((0, 0), (0, D_pad - D)))

    N = B * S
    TB = _round_up(min(token_block, _round_up(N, 8)), 8)
    Np = _round_up(N, TB)
    num_blocks = Np // TB

    # Clamp so a bad id can never read out of bounds.
    # TODO(synk): torch.nn.Embedding raises on out-of-range ids; here they are
    # clamped to the nearest valid row instead.
    ids_flat = jnp.clip(x_ids.reshape(N).astype(jnp.int32), 0, V - 1)
    if Np != N:
        ids_flat = jnp.concatenate(
            [ids_flat, jnp.zeros((Np - N,), jnp.int32)], axis=0)

    table_bytes = V * D_pad * itemsize

    if table_bytes <= resident_table_bytes:
        # ---------------- fast path: VMEM-resident table ----------------
        ids_col = ids_flat.reshape(Np, 1)   # token axis on sublanes
        out_block = TB * D_pad * itemsize
        ids_block = _round_up(TB, 8) * 512           # (TB,1) i32 tile-padded
        vmem_need = 2 * table_bytes + 2 * out_block + 2 * ids_block + (2 << 20)
        vmem_bytes = int(min(48 * 1024 * 1024, max(8 * 1024 * 1024, vmem_need)))

        kernel = functools.partial(_resident_table_kernel,
                                   scale=scale, vocab=V)
        out = pl.pallas_call(
            kernel,
            out_shape=jax.ShapeDtypeStruct((Np, D_pad), out_dtype),
            grid_spec=pltpu.PrefetchScalarGridSpec(
                num_scalar_prefetch=0,
                grid=(num_blocks,),
                in_specs=[
                    pl.BlockSpec((TB, 1), lambda i: (i, 0)),      # ids (VMEM)
                    pl.BlockSpec((V, D_pad), lambda i: (0, 0)),   # resident tbl
                ],
                out_specs=pl.BlockSpec((TB, D_pad), lambda i: (i, 0)),
            ),
            compiler_params=pltpu.CompilerParams(
                dimension_semantics=("parallel",),
                vmem_limit_bytes=vmem_bytes,
            ),
        )(ids_col, table)
    else:
        # ---------------- slow path: HBM table, row-gather DMA ----------
        out_block = TB * D_pad * itemsize
        vmem_need = 2 * out_block + (4 << 20)
        vmem_bytes = int(min(48 * 1024 * 1024, max(8 * 1024 * 1024, vmem_need)))

        kernel = functools.partial(
            _hbm_gather_kernel, scale=scale, tokens_per_block=TB,
            n_tokens=N, window=_DMA_WINDOW)
        out = pl.pallas_call(
            kernel,
            out_shape=jax.ShapeDtypeStruct((Np, D_pad), out_dtype),
            grid_spec=pltpu.PrefetchScalarGridSpec(
                num_scalar_prefetch=0,
                grid=(num_blocks,),
                in_specs=[
                    pl.BlockSpec((TB,), lambda i: (i,),
                                 memory_space=pltpu.MemorySpace.SMEM),
                    pl.BlockSpec(memory_space=pl.ANY),   # table stays in HBM
                ],
                out_specs=pl.BlockSpec((TB, D_pad), lambda i: (i, 0)),
                scratch_shapes=[
                    pltpu.SemaphoreType.DMA((_DMA_WINDOW,)),
                ],
            ),
            compiler_params=pltpu.CompilerParams(
                dimension_semantics=("parallel",),
                vmem_limit_bytes=vmem_bytes,
            ),
        )(ids_flat, table)

    return out[:N, :D].reshape(B, S, D)


if __name__ == "__main__":
    # Small shapes consistent with the module (d_model lane-dense).
    batch, seq = 2, 8
    d_model, input_vocab_size = 128, 512

    key = jax.random.PRNGKey(0)
    k_tab, k_ids = jax.random.split(key)

    # nn.Embedding weight: (vocab, d_model), ~N(0, 1)
    table = jax.random.normal(k_tab, (input_vocab_size, d_model), jnp.float32)
    x = jax.random.randint(k_ids, (batch, seq), 0, input_vocab_size, jnp.int32)

    y = input_embeddings(x, table, d_model=d_model)
    y = jax.block_until_ready(y)

    # Correctness check against plain-JAX reference.
    ref = jnp.take(table, x, axis=0) * math.sqrt(d_model)
    assert y.shape == (batch, seq, d_model)
    assert jnp.allclose(y, ref, atol=1e-5, rtol=1e-5)

    print("KERNEL_OK")
</pallas_src>

<mosaic_0001>
module attributes {stable_mosaic.version = 11 : i64} {
  func.func @_resident_table_kernel(%arg0: i32, %arg1: memref<16x1xi32, #tpu.memory_space<vmem>>, %arg2: memref<512x128xf32, #tpu.memory_space<vmem>>, %arg3: memref<16x128xf32, #tpu.memory_space<vmem>>) attributes {dimension_semantics = [#tpu.dimension_semantics<parallel>], iteration_bounds = array<i64: 1>, scalar_prefetch = 0 : i64, scratch_operands = 0 : i64, tpu.core_type = #tpu.core_type<tc>, window_params = [{transform_indices = @transform_0, window_bounds = array<i64: 16, 1>}, {pipeline_mode = #tpu.pipeline_mode<synchronous>, transform_indices = @transform_1, window_bounds = array<i64: 512, 128>}, {transform_indices = @transform_2, window_bounds = array<i64: 16, 128>}]} {
    %c0 = arith.constant 0 : index
    %c0_0 = arith.constant 0 : index
    %0 = vector.load %arg1[%c0, %c0_0] : memref<16x1xi32, #tpu.memory_space<vmem>>, vector<16x1xi32>
    %1 = tpu.iota {dimensions = array<i32: 1>} : vector<16x512xi32>
    %2 = vector.broadcast %0 : vector<16x1xi32> to vector<16x512xi32>
    %3 = arith.cmpi eq, %2, %1 : vector<16x512xi32>
    %4 = arith.extui %3 : vector<16x512xi1> to vector<16x512xi32>
    %5 = arith.sitofp %4 : vector<16x512xi32> to vector<16x512xf32>
    %c0_1 = arith.constant 0 : index
    %c0_2 = arith.constant 0 : index
    %6 = vector.load %arg2[%c0_1, %c0_2] : memref<512x128xf32, #tpu.memory_space<vmem>>, vector<512x128xf32>
    %cst = arith.constant dense<0.000000e+00> : vector<16x128xf32>
    %7 = tpu.matmul %5, %6, %cst {dimension_numbers = #tpu.dot_dimension_numbers<[1], [0], [0], [1], [0, 0, 1, 1], [], []>} : vector<16x512xf32>, vector<512x128xf32>, vector<16x128xf32> -> vector<16x128xf32>
    %cst_3 = arith.constant 11.3137083 : f32
    %8 = vector.broadcast %cst_3 : f32 to vector<16x128xf32>
    %9 = arith.mulf %7, %8 : vector<16x128xf32>
    %c0_4 = arith.constant 0 : index
    %c0_5 = arith.constant 0 : index
    %10 = vector.load %arg3[%c0_4, %c0_5] : memref<16x128xf32, #tpu.memory_space<vmem>>, vector<16x128xf32>
    tpu.vector_store %arg3[%c0_4, %c0_5], %9 {strides = array<i32>} : memref<16x128xf32, #tpu.memory_space<vmem>>, vector<16x128xf32>,
    return
  }
  func.func @transform_0(%arg0: i32) -> (i32, i32) {
    %c0_i32 = arith.constant 0 : i32
    %c0_i32_0 = arith.constant 0 : i32
    return %arg0, %c0_i32 : i32, i32
  }
  func.func @transform_1(%arg0: i32) -> (i32, i32) {
    %c0_i32 = arith.constant 0 : i32
    %c0_i32_0 = arith.constant 0 : i32
    %c0_i32_1 = arith.constant 0 : i32
    return %c0_i32, %c0_i32_0 : i32, i32
  }
  func.func @transform_2(%arg0: i32) -> (i32, i32) {
    %c0_i32 = arith.constant 0 : i32
    %c0_i32_0 = arith.constant 0 : i32
    return %arg0, %c0_i32 : i32, i32
  }
}

</mosaic_0001>

<llo_original>
// kernel: tpu_custom_call.1
$region0: #{tpu_custom_call.1}
  #allocation0 [shape = 'u32[]', space=smem, size = 0x4, offset = 0x4, fixed_abs, tag = 'smem constant byte address 0x4 - core index']
  #allocation1 [shape = 'u32[144,128]{1,0:T(1,128)}', space=vmem, size = 0x12000, scoped, tag = 'internal scratch']
  %s0 = inlined_call_operand.vmem [shape: s32[16,1], index: 0, kind: input, shape index: {}]
  %s1 = inlined_call_operand.hbm [shape: f32[512,128], index: 1, kind: input, shape index: {}]
  %s2 = inlined_call_operand.hbm [shape: f32[16,128], index: 2, kind: output, shape index: {}]
  %s3 = sld [smem:[#allocation0]]
  $region22: #{tpu_custom_call.1} parent=0
    _
  %s5 = ssub.s32 1, %s3
  %s6 = scalar_select 0, %s5, %s3
  $region1: #{tpu_custom_call.1} parent=0
    #allocation2 [shape = 'u8[262144]{0}', space=vmem, size = 0x40000, scoped, tag = 'input window, operand 1, single buffered']
    #allocation3 [shape = 's32[1]{0}', space=sflag, size = 0x4, scoped, tag = 'scoped memory for tpu_custom_call.1']
    #allocation4 [shape = 's32[1]{0}', space=sflag, size = 0x4, scoped, tag = 'scoped memory for tpu_custom_call.1']
    #allocation5 [shape = 'u8[8192]{0}', space=vmem, size = 0x2000, scoped, tag = 'output window, operand 0, single buffered']
    %7 = vsyncpa [#allocation3], 0
    %8 = vsyncpa [#allocation4], 0
    // Predicated region
    $region2: #{tpu_custom_call.1} parent=1 // pred_check
      _
    $region3: #{tpu_custom_call.1} parent=1 // pred_check_branch
      %10 = sbr.rel (0) target = $region5
    $region4: #{tpu_custom_call.1} parent=1 // pred_region
      _
    $region5: #{tpu_custom_call.1} parent=1 // pred_fallthru
      _
    // Predicated region
    $region6: #{tpu_custom_call.1} parent=1 // pred_check
      _
    $region7: #{tpu_custom_call.1} parent=1 // pred_check_branch
      %12 = sbr.rel (0) target = $region9
    $region8: #{tpu_custom_call.1} parent=1 // pred_region
      %s14 = ssub.s32 8192, 8192
      %15 = vsyncadd [#allocation3], %s14
      %s16 = sshll.u32 [#allocation2], 4
      %s17 = int_to_ptr.vmem [resolvable:$true] %s16
      %22 = dma.hbm_to_vmem [thread:$0]  %s1, 8192, %s17, [#allocation3], 128, 128, 8
    $region9: #{tpu_custom_call.1} parent=1 // pred_fallthru
      _
    // Predicated region
    $region10: #{tpu_custom_call.1} parent=1 // pred_check
      _
    $region11: #{tpu_custom_call.1} parent=1 // pred_check_branch
      %24 = sbr.rel (0) target = $region13
    $region12: #{tpu_custom_call.1} parent=1 // pred_region
      %25 = dma.done [#allocation3], 8192
    $region13: #{tpu_custom_call.1} parent=1 // pred_fallthru
      _
    %v26 = vld [vmem:[%s0] sm:$0xff]
    %v27 = vld [vmem:[%s0 + $0x8] sm:$0xff]
    %v28 = vlaneseq
    %v29 = vand.u32 %v28, 127
    %v30 = vadd.s32 %v29, 128
    %v31 = vadd.s32 %v29, 256
    %v32 = vadd.s32 %v29, 384
    %33 = vset.pattern.permute.xlu0 0
    %34 = vperm.xlu0 %33, %v26
    %v35 = vpop.permute.xlu0 %34
    %36 = vset.pattern.permute.xlu0 0
    %37 = vperm.xlu0 %36, %v27
    %v38 = vpop.permute.xlu0 %37
    %vm39 = vcmp.eq.s32.totalorder %v35, %v29
    %vm40 = vcmp.eq.s32.totalorder %v35, %v30
    %vm41 = vcmp.eq.s32.totalorder %v35, %v31
    %vm42 = vcmp.eq.s32.totalorder %v35, %v32
    %vm43 = vcmp.eq.s32.totalorder %v38, %v29
    %vm44 = vcmp.eq.s32.totalorder %v38, %v30
    %vm45 = vcmp.eq.s32.totalorder %v38, %v31
    %vm46 = vcmp.eq.s32.totalorder %v38, %v32
    %v47 = vsel %vm39, 1, 0
    %v48 = vsel %vm40, 1, 0
    %v49 = vsel %vm41, 1, 0
    %v50 = vsel %vm42, 1, 0
    %v51 = vsel %vm43, 1, 0
    %v52 = vsel %vm44, 1, 0
    %v53 = vsel %vm45, 1, 0
    %v54 = vsel %vm46, 1, 0
    %v55 = vcvt.s32.f32 %v47
    %v56 = vcvt.s32.f32 %v48
    %v57 = vcvt.s32.f32 %v49
    %v58 = vcvt.s32.f32 %v50
    %v59 = vcvt.s32.f32 %v51
    %v60 = vcvt.s32.f32 %v52
    %v61 = vcvt.s32.f32 %v53
    %v62 = vcvt.s32.f32 %v54
    %v63 = vld [vmem:[#allocation2] sm:$0xff]
    %v64 = vld [vmem:[#allocation2 + $0x8] sm:$0xff]
    %v65 = vld [vmem:[#allocation2 + $0x10] sm:$0xff]
    %v66 = vld [vmem:[#allocation2 + $0x18] sm:$0xff]
    %v67 = vld [vmem:[#allocation2 + $0x20] sm:$0xff]
    %v68 = vld [vmem:[#allocation2 + $0x28] sm:$0xff]
    %v69 = vld [vmem:[#allocation2 + $0x30] sm:$0xff]
    %v70 = vld [vmem:[#allocation2 + $0x38] sm:$0xff]
    %v71 = vld [vmem:[#allocation2 + $0x40] sm:$0xff]
    %v72 = vld [vmem:[#allocation2 + $0x48] sm:$0xff]
    %v73 = vld [vmem:[#allocation2 + $0x50] sm:$0xff]
    %v74 = vld [vmem:[#allocation2 + $0x58] sm:$0xff]
    %v75 = vld [vmem:[#allocation2 + $0x60] sm:$0xff]
    %v76 = vld [vmem:[#allocation2 + $0x68] sm:$0xff]
    %v77 = vld [vmem:[#allocation2 + $0x70] sm:$0xff]
    %v78 = vld [vmem:[#allocation2 + $0x78] sm:$0xff]
    %v79 = vld [vmem:[#allocation2 + $0x80] sm:$0xff]
    %v80 = vld [vmem:[#allocation2 + $0x88] sm:$0xff]
    %v81 = vld [vmem:[#allocation2 + $0x90] sm:$0xff]
    %v82 = vld [vmem:[#allocation2 + $0x98] sm:$0xff]
    %v83 = vld [vmem:[#allocation2 + $0xa0] sm:$0xff]
    %v84 = vld [vmem:[#allocation2 + $0xa8] sm:$0xff]
    %v85 = vld [vmem:[#allocation2 + $0xb0] sm:$0xff]
    %v86 = vld [vmem:[#allocation2 + $0xb8] sm:$0xff]
    %v87 = vld [vmem:[#allocation2 + $0xc0] sm:$0xff]
    %v88 = vld [vmem:[#allocation2 + $0xc8] sm:$0xff]
    %v89 = vld [vmem:[#allocation2 + $0xd0] sm:$0xff]
    %v90 = vld [vmem:[#allocation2 + $0xd8] sm:$0xff]
    %v91 = vld [vmem:[#allocation2 + $0xe0] sm:$0xff]
    %v92 = vld [vmem:[#allocation2 + $0xe8] sm:$0xff]
    %v93 = vld [vmem:[#allocation2 + $0xf0] sm:$0xff]
    %v94 = vld [vmem:[#allocation2 + $0xf8] sm:$0xff]
    %v95 = vld [vmem:[#allocation2 + $0x100] sm:$0xff]
    %v96 = vld [vmem:[#allocation2 + $0x108] sm:$0xff]
    %v97 = vld [vmem:[#allocation2 + $0x110] sm:$0xff]
    %v98 = vld [vmem:[#allocation2 + $0x118] sm:$0xff]
    %v99 = vld [vmem:[#allocation2 + $0x120] sm:$0xff]
    %v100 = vld [vmem:[#allocation2 + $0x128] sm:$0xff]
    %v101 = vld [vmem:[#allocation2 + $0x130] sm:$0xff]
    %v102 = vld [vmem:[#allocation2 + $0x138] sm:$0xff]
    %v103 = vld [vmem:[#allocation2 + $0x140] sm:$0xff]
    %v104 = vld [vmem:[#allocation2 + $0x148] sm:$0xff]
    %v105 = vld [vmem:[#allocation2 + $0x150] sm:$0xff]
    %v106 = vld [vmem:[#allocation2 + $0x158] sm:$0xff]
    %v107 = vld [vmem:[#allocation2 + $0x160] sm:$0xff]
    %v108 = vld [vmem:[#allocation2 + $0x168] sm:$0xff]
    %v109 = vld [vmem:[#allocation2 + $0x170] sm:$0xff]
    %v110 = vld [vmem:[#allocation2 + $0x178] sm:$0xff]
    %v111 = vld [vmem:[#allocation2 + $0x180] sm:$0xff]
    %v112 = vld [vmem:[#allocation2 + $0x188] sm:$0xff]
    %v113 = vld [vmem:[#allocation2 + $0x190] sm:$0xff]
    %v114 = vld [vmem:[#allocation2 + $0x198] sm:$0xff]
    %v115 = vld [vmem:[#allocation2 + $0x1a0] sm:$0xff]
    %v116 = vld [vmem:[#allocation2 + $0x1a8] sm:$0xff]
    %v117 = vld [vmem:[#allocation2 + $0x1b0] sm:$0xff]
    %v118 = vld [vmem:[#allocation2 + $0x1b8] sm:$0xff]
    %v119 = vld [vmem:[#allocation2 + $0x1c0] sm:$0xff]
    %v120 = vld [vmem:[#allocation2 + $0x1c8] sm:$0xff]
    %v121 = vld [vmem:[#allocation2 + $0x1d0] sm:$0xff]
    %v122 = vld [vmem:[#allocation2 + $0x1d8] sm:$0xff]
    %v123 = vld [vmem:[#allocation2 + $0x1e0] sm:$0xff]
    %v124 = vld [vmem:[#allocation2 + $0x1e8] sm:$0xff]
    %v125 = vld [vmem:[#allocation2 + $0x1f0] sm:$0xff]
    %v126 = vld [vmem:[#allocation2 + $0x1f8] sm:$0xff]
    %127 = vmatprep.subr.mxu0 0.0
    %128 = vmatpush1.msra.mxu0 %v78
    %129 = vmatprep.subr.mxu0 0.0
    %130 = vmatpush1.msra.mxu0 %v77
    %131 = vmatprep.subr.mxu0 0.0
    %132 = vmatpush1.msra.mxu0 %v76
    %133 = vmatprep.subr.mxu0 0.0
    %134 = vmatpush1.msra.mxu0 %v75
    %135 = vmatprep.subr.mxu0 0.0
    %136 = vmatpush1.msra.mxu0 %v74
    %137 = vmatprep.subr.mxu0 0.0
    %138 = vmatpush1.msra.mxu0 %v73
    %139 = vmatprep.subr.mxu0 0.0
    %140 = vmatpush1.msra.mxu0 %v72
    %141 = vmatprep.subr.mxu0 0.0
    %142 = vmatpush1.msra.mxu0 %v71
    %143 = vmatprep.subr.mxu0 0.0
    %144 = vmatpush1.msra.mxu0 %v70
    %145 = vmatprep.subr.mxu0 0.0
    %146 = vmatpush1.msra.mxu0 %v69
    %147 = vmatprep.subr.mxu0 0.0
    %148 = vmatpush1.msra.mxu0 %v68
    %149 = vmatprep.subr.mxu0 0.0
    %150 = vmatpush1.msra.mxu0 %v67
    %151 = vmatprep.subr.mxu0 0.0
    %152 = vmatpush1.msra.mxu0 %v66
    %153 = vmatprep.subr.mxu0 0.0
    %154 = vmatpush1.msra.mxu0 %v65
    %155 = vmatprep.subr.mxu0 0.0
    %156 = vmatpush1.msra.mxu0 %v64
    %157 = vmatprep.subr.mxu0 0.0
    %158 = vmatpush1.msra.mxu0 %v63
    %159 = vmatprep.subr.mxu0 0.0
    %160 = vmatpush2.msra.mxu0 %v94
    %161 = vmatprep.subr.mxu0 0.0
    %162 = vmatpush2.msra.mxu0 %v93
    %163 = vmatprep.subr.mxu0 0.0
    %164 = vmatpush2.msra.mxu0 %v92
    %165 = vmatprep.subr.mxu0 0.0
    %166 = vmatpush2.msra.mxu0 %v91
    %167 = vmatprep.subr.mxu0 0.0
    %168 = vmatpush2.msra.mxu0 %v90
    %169 = vmatprep.subr.mxu0 0.0
    %170 = vmatpush2.msra.mxu0 %v89
    %171 = vmatprep.subr.mxu0 0.0
    %172 = vmatpush2.msra.mxu0 %v88
    %173 = vmatprep.subr.mxu0 0.0
    %174 = vmatpush2.msra.mxu0 %v87
    %175 = vmatprep.subr.mxu0 0.0
    %176 = vmatpush2.msra.mxu0 %v86
    %177 = vmatprep.subr.mxu0 0.0
    %178 = vmatpush2.msra.mxu0 %v85
    %179 = vmatprep.subr.mxu0 0.0
    %180 = vmatpush2.msra.mxu0 %v84
    %181 = vmatprep.subr.mxu0 0.0
    %182 = vmatpush2.msra.mxu0 %v83
    %183 = vmatprep.subr.mxu0 0.0
    %184 = vmatpush2.msra.mxu0 %v82
    %185 = vmatprep.subr.mxu0 0.0
    %186 = vmatpush2.msra.mxu0 %v81
    %187 = vmatprep.subr.mxu0 0.0
    %188 = vmatpush2.msra.mxu0 %v80
    %189 = vmatprep.subr.mxu0 0.0
    %190 = vmatpush2.msra.mxu0 %v79
    %191 = vmatprep.mubr.f32.mxu0 %v56
    %192 = vmatmul.mubr.f32.gmra.mxu0 %v55
    %v193 = vpop.f32.mrf.mxu0
    %v194 = vadd.f32 0.0, %v193
    %v195 = vpop.f32.mrf.mxu0
    %196 = vmatprep.mubr.f32.mxu0 %v60
    %197 = vmatmul.mubr.f32.gmra.mxu0 %v59
    %v198 = vpop.f32.mrf.mxu0
    %v199 = vadd.f32 0.0, %v198
    %v200 = vpop.f32.mrf.mxu0
    %201 = vdwg.mxu0
    %202 = vmatprep.subr.mxu0 0.0
    %203 = vmatpush1.msra.mxu0 %v110
    %204 = vmatprep.subr.mxu0 0.0
    %205 = vmatpush1.msra.mxu0 %v109
    %206 = vmatprep.subr.mxu0 0.0
    %207 = vmatpush1.msra.mxu0 %v108
    %208 = vmatprep.subr.mxu0 0.0
    %209 = vmatpush1.msra.mxu0 %v107
    %210 = vmatprep.subr.mxu0 0.0
    %211 = vmatpush1.msra.mxu0 %v106
    %212 = vmatprep.subr.mxu0 0.0
    %213 = vmatpush1.msra.mxu0 %v105
    %214 = vmatprep.subr.mxu0 0.0
    %215 = vmatpush1.msra.mxu0 %v104
    %216 = vmatprep.subr.mxu0 0.0
    %217 = vmatpush1.msra.mxu0 %v103
    %218 = vmatprep.subr.mxu0 0.0
    %219 = vmatpush1.msra.mxu0 %v102
    %220 = vmatprep.subr.mxu0 0.0
    %221 = vmatpush1.msra.mxu0 %v101
    %222 = vmatprep.subr.mxu0 0.0
    %223 = vmatpush1.msra.mxu0 %v100
    %224 = vmatprep.subr.mxu0 0.0
    %225 = vmatpush1.msra.mxu0 %v99
    %226 = vmatprep.subr.mxu0 0.0
    %227 = vmatpush1.msra.mxu0 %v98
    %228 = vmatprep.subr.mxu0 0.0
    %229 = vmatpush1.msra.mxu0 %v97
    %230 = vmatprep.subr.mxu0 0.0
    %231 = vmatpush1.msra.mxu0 %v96
    %232 = vmatprep.subr.mxu0 0.0
    %233 = vmatpush1.msra.mxu0 %v95
    %234 = vmatprep.subr.mxu0 0.0
    %235 = vmatpush2.msra.mxu0 %v126
    %236 = vmatprep.subr.mxu0 0.0
    %237 = vmatpush2.msra.mxu0 %v125
    %238 = vmatprep.subr.mxu0 0.0
    %239 = vmatpush2.msra.mxu0 %v124
    %240 = vmatprep.subr.mxu0 0.0
    %241 = vmatpush2.msra.mxu0 %v123
    %242 = vmatprep.subr.mxu0 0.0
    %243 = vmatpush2.msra.mxu0 %v122
    %244 = vmatprep.subr.mxu0 0.0
    %245 = vmatpush2.msra.mxu0 %v121
    %246 = vmatprep.subr.mxu0 0.0
    %247 = vmatpush2.msra.mxu0 %v120
    %248 = vmatprep.subr.mxu0 0.0
    %249 = vmatpush2.msra.mxu0 %v119
    %250 = vmatprep.subr.mxu0 0.0
    %251 = vmatpush2.msra.mxu0 %v118
    %252 = vmatprep.subr.mxu0 0.0
    %253 = vmatpush2.msra.mxu0 %v117
    %254 = vmatprep.subr.mxu0 0.0
    %255 = vmatpush2.msra.mxu0 %v116
    %256 = vmatprep.subr.mxu0 0.0
    %257 = vmatpush2.msra.mxu0 %v115
    %258 = vmatprep.subr.mxu0 0.0
    %259 = vmatpush2.msra.mxu0 %v114
    %260 = vmatprep.subr.mxu0 0.0
    %261 = vmatpush2.msra.mxu0 %v113
    %262 = vmatprep.subr.mxu0 0.0
    %263 = vmatpush2.msra.mxu0 %v112
    %264 = vmatprep.subr.mxu0 0.0
    %265 = vmatpush2.msra.mxu0 %v111
    %266 = vmatprep.mubr.f32.mxu0 %v58
    %267 = vmatmul.mubr.f32.gmra.mxu0 %v57
    %v268 = vpop.f32.mrf.mxu0
    %v269 = vadd.f32 %v194, %v268
    %v270 = vpop.f32.mrf.mxu0
    %271 = vmatprep.mubr.f32.mxu0 %v62
    %272 = vmatmul.mubr.f32.gmra.mxu0 %v61
    %v273 = vpop.f32.mrf.mxu0
    %v274 = vadd.f32 %v199, %v273
    %v275 = vpop.f32.mrf.mxu0
    %276 = vdwg.mxu0
    %v277 = vmul.f32 %v269, 11.313708
    %v278 = vmul.f32 %v274, 11.313708
    %279 = vst [vmem:[#allocation5] sm:$0xff] %v277
    %280 = vst [vmem:[#allocation5 + $0x8] sm:$0xff] %v278
    // Predicated region
    $region14: #{tpu_custom_call.1} parent=1 // pred_check
      _
    $region15: #{tpu_custom_call.1} parent=1 // pred_check_branch
      %282 = sbr.rel (0) target = $region17
    $region16: #{tpu_custom_call.1} parent=1 // pred_region
      %s284 = ssub.s32 256, 256
      %285 = vsyncadd [#allocation4], %s284
      %s286 = sshll.u32 [#allocation5], 4
      %s287 = int_to_ptr.vmem [resolvable:$true] %s286
      %292 = dma.vmem_to_hbm [thread:$0]  %s287, 256, %s2, [#allocation4], 128, 128, 8
    $region17: #{tpu_custom_call.1} parent=1 // pred_fallthru
      _
    // Predicated region
    $region18: #{tpu_custom_call.1} parent=1 // pred_check
      _
    $region19: #{tpu_custom_call.1} parent=1 // pred_check_branch
      %294 = sbr.rel (0) target = $region21
    $region20: #{tpu_custom_call.1} parent=1 // pred_region
      %295 = dma.done [#allocation4], 256
    $region21: #{tpu_custom_call.1} parent=1 // pred_fallthru
      _
    %296 = vsyncpa [#allocation3], 1
    %297 = vsyncpa [#allocation4], 1

</llo_original>
